<compile_context>
chip_gen: v7x
topology: tpu7x:2x2x1
jax: 0.10.0
libtpu: 0.0.40
codegen_flags: <defaults>
</compile_context>

<pallas_src>
import functools

import jax
import jax.numpy as jnp
from jax.experimental import pallas as pl
from jax.experimental.pallas import tpu as pltpu


def _edm_loss_kernel(tri_ref, tgt_ref, est_ref, out_ref, acc_ref, *, inv_n):
    pid = pl.program_id(0)

    @pl.when(pid == 0)
    def _():
        acc_ref[...] = jnp.zeros_like(acc_ref)

    d = est_ref[...] - tgt_ref[...]                              # (TILE, W) f32
    # Per-group cumsum via block-diagonal upper-triangular matmul (MXU).
    cdf = jnp.dot(
        d,
        tri_ref[...],
        preferred_element_type=jnp.float32,
        precision=jax.lax.Precision.HIGHEST,
    )                                                            # (TILE, W)
    sq = cdf * cdf
    part = jnp.sum(sq, axis=1, keepdims=True)                    # (TILE, 1) lane reduce
    part = jnp.sum(part, axis=0, keepdims=True)                  # (1, 1)    sublane reduce
    acc_ref[...] += part

    @pl.when(pid == pl.num_programs(0) - 1)
    def _():
        out_ref[...] = jnp.sqrt(acc_ref[...] * inv_n)


_MAX_TILE_ROWS = 4096            # packed rows per grid step (multiple of 8)
_VMEM_BUDGET = 24 * 1024 * 1024  # bytes of VMEM we allow the pipeline to use


def _round_up(x, m):
    return ((x + m - 1) // m) * m


def edm_loss(p_target: jax.Array, p_estimate: jax.Array) -> jax.Array:
    assert p_target.shape == p_estimate.shape
    assert p_target.ndim == 2, "expected (batch, num_classes) distributions"
    B, C = p_target.shape

    # --- lane-packing parameters ---
    k = max(1, 128 // C)            # original rows packed per lane-dense row
    wc = k * C                      # packed content width
    W = _round_up(wc, 128)          # lane-padded width

    # --- VMEM-budget-aware tile size (2 inputs x 2 pipeline buffers + tri x2) ---
    tri_bytes = 2 * W * W * 4
    per_row_bytes = 2 * 2 * W * 4
    tile_budget = max(8, ((_VMEM_BUDGET - tri_bytes) // per_row_bytes) // 8 * 8)

    rows_packed = -(-B // k)                                     # ceil(B / k)
    tile = min(_MAX_TILE_ROWS, tile_budget, _round_up(rows_packed, 8))
    rows_padded = _round_up(rows_packed, tile)
    b_padded = rows_padded * k
    grid = (rows_padded // tile,)

    def pack(x):
        x = x.astype(jnp.float32)
        x = jnp.pad(x, ((0, b_padded - B), (0, 0)))              # zero rows -> 0 contribution
        x = x.reshape(rows_padded, wc)                           # contiguous (free) reshape
        if W > wc:
            x = jnp.pad(x, ((0, 0), (0, W - wc)))                # zero lanes -> 0 contribution
        return x

    tgt = pack(p_target)
    est = pack(p_estimate)

    # Block-diagonal upper-triangular 0/1 matrix: k independent CxC cumsum blocks,
    # zero in the lane-padding region. Built once outside the kernel.
    idx = jnp.arange(W)
    blk = idx // C
    valid = idx < wc
    tri = (
        (blk[:, None] == blk[None, :])
        & (idx[:, None] <= idx[None, :])
        & valid[:, None]
        & valid[None, :]
    ).astype(jnp.float32)                                        # (W, W)

    inv_n = 1.0 / float(B * C)  # GLOBAL divisor (true B*C, not the padded shape)

    out = pl.pallas_call(
        functools.partial(_edm_loss_kernel, inv_n=inv_n),
        out_shape=jax.ShapeDtypeStruct((1, 1), jnp.float32),
        grid_spec=pltpu.PrefetchScalarGridSpec(
            num_scalar_prefetch=0,
            grid=grid,
            in_specs=[
                pl.BlockSpec((W, W), lambda i: (0, 0)),          # tri: resident constant
                pl.BlockSpec((tile, W), lambda i: (i, 0)),       # target tile
                pl.BlockSpec((tile, W), lambda i: (i, 0)),       # estimate tile
            ],
            out_specs=pl.BlockSpec((1, 1), lambda i: (0, 0)),
            scratch_shapes=[pltpu.VMEM((1, 1), jnp.float32)],    # running sum-of-squares
        ),
        compiler_params=pltpu.CompilerParams(
            dimension_semantics=("arbitrary",),                  # reduction axis
            vmem_limit_bytes=32 * 1024 * 1024,
        ),
    )(tri, tgt, est)
    return out[0, 0]


if __name__ == "__main__":
    key = jax.random.PRNGKey(0)
    k1, k2 = jax.random.split(key)

    B, C = 8, 10  # e.g. 8 samples, 10 score bins (PARA-style distributions)

    p_target = jax.nn.softmax(jax.random.normal(k1, (B, C), dtype=jnp.float32), axis=1)
    p_estimate = jax.nn.softmax(jax.random.normal(k2, (B, C), dtype=jnp.float32), axis=1)

    loss = edm_loss(p_target, p_estimate)
    jax.block_until_ready(loss)

    # Pure-JAX reference (same math as the torch module).
    ref = jnp.sqrt(
        jnp.mean(
            jnp.square(jnp.cumsum(p_estimate, axis=1) - jnp.cumsum(p_target, axis=1))
        )
    )
    assert jnp.allclose(loss, ref, atol=1e-6, rtol=1e-6), (loss, ref)

    print("KERNEL_OK")
</pallas_src>

<mosaic_0001>
module attributes {stable_mosaic.version = 11 : i64} {
  func.func @_edm_loss_kernel(%arg0: i32, %arg1: memref<128x128xf32, #tpu.memory_space<vmem>>, %arg2: memref<8x128xf32, #tpu.memory_space<vmem>>, %arg3: memref<8x128xf32, #tpu.memory_space<vmem>>, %arg4: memref<1x1xf32, #tpu.memory_space<vmem>>, %arg5: memref<1x1xf32, #tpu.memory_space<vmem>>) attributes {dimension_semantics = [#tpu.dimension_semantics<arbitrary>], iteration_bounds = array<i64: 1>, scalar_prefetch = 0 : i64, scratch_operands = 1 : i64, tpu.core_type = #tpu.core_type<tc>, window_params = [{pipeline_mode = #tpu.pipeline_mode<synchronous>, transform_indices = @transform_0, window_bounds = array<i64: 128, 128>}, {transform_indices = @transform_1, window_bounds = array<i64: 8, 128>}, {transform_indices = @transform_2, window_bounds = array<i64: 8, 128>}, {pipeline_mode = #tpu.pipeline_mode<synchronous>, transform_indices = @transform_3, window_bounds = array<i64: 1, 1>}]} {
    %c0_i32 = arith.constant 0 : i32
    %0 = arith.cmpi eq, %arg0, %c0_i32 : i32
    %1 = arith.extui %0 : i1 to i32
    %c0_i32_0 = arith.constant 0 : i32
    %2 = arith.cmpi ne, %1, %c0_i32_0 : i32
    scf.if %2 {
      %cst_14 = arith.constant 0.000000e+00 : f32
      %19 = vector.broadcast %cst_14 : f32 to vector<1x1xf32>
      %c0_15 = arith.constant 0 : index
      %c0_16 = arith.constant 0 : index
      %20 = vector.load %arg5[%c0_15, %c0_16] : memref<1x1xf32, #tpu.memory_space<vmem>>, vector<1x1xf32>
      tpu.vector_store %arg5[%c0_15, %c0_16], %19 {strides = array<i32>} : memref<1x1xf32, #tpu.memory_space<vmem>>, vector<1x1xf32>,
    } else {
    }
    %c0 = arith.constant 0 : index
    %c0_1 = arith.constant 0 : index
    %3 = vector.load %arg3[%c0, %c0_1] : memref<8x128xf32, #tpu.memory_space<vmem>>, vector<8x128xf32>
    %c0_2 = arith.constant 0 : index
    %c0_3 = arith.constant 0 : index
    %4 = vector.load %arg2[%c0_2, %c0_3] : memref<8x128xf32, #tpu.memory_space<vmem>>, vector<8x128xf32>
    %5 = arith.subf %3, %4 : vector<8x128xf32>
    %c0_4 = arith.constant 0 : index
    %c0_5 = arith.constant 0 : index
    %6 = vector.load %arg1[%c0_4, %c0_5] : memref<128x128xf32, #tpu.memory_space<vmem>>, vector<128x128xf32>
    %cst = arith.constant dense<0.000000e+00> : vector<8x128xf32>
    %7 = tpu.matmul %5, %6, %cst {dimension_numbers = #tpu.dot_dimension_numbers<[1], [0], [0], [1], [0, 0, 1, 1], [], []>, precision = #tpu.contract_precision<fp32>} : vector<8x128xf32>, vector<128x128xf32>, vector<8x128xf32> -> vector<8x128xf32>
    %8 = arith.mulf %7, %7 : vector<8x128xf32>
    %cst_6 = arith.constant dense<0.000000e+00> : vector<8xf32>
    %9 = vector.multi_reduction <add>, %8, %cst_6 [1] : vector<8x128xf32> to vector<8xf32>
    %10 = vector.shape_cast %9 : vector<8xf32> to vector<8x1xf32>
    %cst_7 = arith.constant dense<0.000000e+00> : vector<1xf32>
    %11 = vector.multi_reduction <add>, %10, %cst_7 [0] : vector<8x1xf32> to vector<1xf32>
    %12 = vector.shape_cast %11 : vector<1xf32> to vector<1x1xf32>
    %c0_8 = arith.constant 0 : index
    %c0_9 = arith.constant 0 : index
    %13 = vector.load %arg5[%c0_8, %c0_9] : memref<1x1xf32, #tpu.memory_space<vmem>>, vector<1x1xf32>
    %14 = arith.addf %13, %12 : vector<1x1xf32>
    %c0_10 = arith.constant 0 : index
    %c0_11 = arith.constant 0 : index
    %15 = vector.load %arg5[%c0_10, %c0_11] : memref<1x1xf32, #tpu.memory_space<vmem>>, vector<1x1xf32>
    tpu.vector_store %arg5[%c0_10, %c0_11], %14 {strides = array<i32>} : memref<1x1xf32, #tpu.memory_space<vmem>>, vector<1x1xf32>,
    %c0_i32_12 = arith.constant 0 : i32
    %16 = arith.cmpi eq, %arg0, %c0_i32_12 : i32
    %17 = arith.extui %16 : i1 to i32
    %c0_i32_13 = arith.constant 0 : i32
    %18 = arith.cmpi ne, %17, %c0_i32_13 : i32
    scf.if %18 {
      %c0_14 = arith.constant 0 : index
      %c0_15 = arith.constant 0 : index
      %19 = vector.load %arg5[%c0_14, %c0_15] : memref<1x1xf32, #tpu.memory_space<vmem>>, vector<1x1xf32>
      %cst_16 = arith.constant 1.250000e-02 : f32
      %20 = vector.broadcast %cst_16 : f32 to vector<1x1xf32>
      %21 = arith.mulf %19, %20 : vector<1x1xf32>
      %22 = math.sqrt %21 : vector<1x1xf32>
      %c0_17 = arith.constant 0 : index
      %c0_18 = arith.constant 0 : index
      %23 = vector.load %arg4[%c0_17, %c0_18] : memref<1x1xf32, #tpu.memory_space<vmem>>, vector<1x1xf32>
      tpu.vector_store %arg4[%c0_17, %c0_18], %22 {strides = array<i32>} : memref<1x1xf32, #tpu.memory_space<vmem>>, vector<1x1xf32>,
    } else {
    }
    return
  }
  func.func @transform_0(%arg0: i32) -> (i32, i32) {
    %c0_i32 = arith.constant 0 : i32
    %c0_i32_0 = arith.constant 0 : i32
    %c0_i32_1 = arith.constant 0 : i32
    return %c0_i32, %c0_i32_0 : i32, i32
  }
  func.func @transform_1(%arg0: i32) -> (i32, i32) {
    %c0_i32 = arith.constant 0 : i32
    %c0_i32_0 = arith.constant 0 : i32
    return %arg0, %c0_i32 : i32, i32
  }
  func.func @transform_2(%arg0: i32) -> (i32, i32) {
    %c0_i32 = arith.constant 0 : i32
    %c0_i32_0 = arith.constant 0 : i32
    return %arg0, %c0_i32 : i32, i32
  }
  func.func @transform_3(%arg0: i32) -> (i32, i32) {
    %c0_i32 = arith.constant 0 : i32
    %c0_i32_0 = arith.constant 0 : i32
    %c0_i32_1 = arith.constant 0 : i32
    return %c0_i32, %c0_i32_0 : i32, i32
  }
}

</mosaic_0001>

<llo_original>
// kernel: tpu_custom_call.1
$region0: #{tpu_custom_call.1}
  #allocation0 [shape = 'u32[]', space=smem, size = 0x4, offset = 0x4, fixed_abs, tag = 'smem constant byte address 0x4 - core index']
  #allocation1 [shape = 'u32[144,128]{1,0:T(1,128)}', space=vmem, size = 0x12000, scoped, tag = 'internal scratch']
  #allocation2 [shape = 'f32[1,1]{1,0:T(1,128)}', space=vmem, size = 0x200, scoped, tag = 'scratch operand']
  %s0 = inlined_call_operand.hbm [shape: f32[128,128], index: 0, kind: input, shape index: {}]
  %s1 = inlined_call_operand.hbm [shape: f32[8,128], index: 1, kind: input, shape index: {}]
  %s2 = inlined_call_operand.hbm [shape: f32[8,128], index: 2, kind: input, shape index: {}]
  %s3 = inlined_call_operand.hbm [shape: f32[1,1], index: 3, kind: output, shape index: {}]
  %s4 = sld [smem:[#allocation0]]
  $region42: #{tpu_custom_call.1} parent=0
    _
  %s6 = ssub.s32 1, %s4
  %s7 = scalar_select 0, %s6, %s4
  $region1: #{tpu_custom_call.1} parent=0
    #allocation3 [shape = 'u8[65536]{0}', space=vmem, size = 0x10000, scoped, tag = 'input window, operand 0, single buffered']
    #allocation4 [shape = 's32[1]{0}', space=sflag, size = 0x4, scoped, tag = 'scoped memory for tpu_custom_call.1']
    #allocation5 [shape = 's32[1]{0}', space=sflag, size = 0x4, scoped, tag = 'scoped memory for tpu_custom_call.1']
    #allocation6 [shape = 'u8[4096]{0}', space=vmem, size = 0x1000, scoped, tag = 'input window, operand 1, single buffered']
    #allocation7 [shape = 's32[1]{0}', space=sflag, size = 0x4, scoped, tag = 'scoped memory for tpu_custom_call.1']
    #allocation8 [shape = 'u8[4096]{0}', space=vmem, size = 0x1000, scoped, tag = 'input window, operand 2, single buffered']
    #allocation9 [shape = 'u8[512]{0}', space=vmem, size = 0x400, scoped, tag = 'output window, operand 0, single buffered']
    %8 = vsyncpa [#allocation4], 0
    %9 = vsyncpa [#allocation7], 0
    %10 = vsyncpa [#allocation5], 0
    // Predicated region
    $region2: #{tpu_custom_call.1} parent=1 // pred_check
      _
    $region3: #{tpu_custom_call.1} parent=1 // pred_check_branch
      %12 = sbr.rel (0) target = $region5
    $region4: #{tpu_custom_call.1} parent=1 // pred_region
      %s14 = ssub.s32 2048, 2048
      %15 = vsyncadd [#allocation4], %s14
      %s16 = sshll.u32 [#allocation3], 4
      %s17 = int_to_ptr.vmem [resolvable:$true] %s16
      %22 = dma.hbm_to_vmem [thread:$0]  %s0, 2048, %s17, [#allocation4], 128, 128, 8
    $region5: #{tpu_custom_call.1} parent=1 // pred_fallthru
      _
    // Predicated region
    $region6: #{tpu_custom_call.1} parent=1 // pred_check
      _
    $region7: #{tpu_custom_call.1} parent=1 // pred_check_branch
      %24 = sbr.rel (0) target = $region9
    $region8: #{tpu_custom_call.1} parent=1 // pred_region
      %s26 = ssub.s32 128, 128
      %27 = vsyncadd [#allocation7], %s26
      %s29 = sshll.u32 [#allocation6], 4
      %s30 = int_to_ptr.vmem [resolvable:$true] %s29
      %32 = dma.hbm_to_vmem [thread:$0]  %s1, 128, %s30, [#allocation7]
    $region9: #{tpu_custom_call.1} parent=1 // pred_fallthru
      _
    // Predicated region
    $region10: #{tpu_custom_call.1} parent=1 // pred_check
      _
    $region11: #{tpu_custom_call.1} parent=1 // pred_check_branch
      %34 = sbr.rel (0) target = $region13
    $region12: #{tpu_custom_call.1} parent=1 // pred_region
      %s36 = ssub.s32 128, 128
      %37 = vsyncadd [#allocation7], %s36
      %s39 = sshll.u32 [#allocation8], 4
      %s40 = int_to_ptr.vmem [resolvable:$true] %s39
      %42 = dma.hbm_to_vmem [thread:$0]  %s2, 128, %s40, [#allocation7]
    $region13: #{tpu_custom_call.1} parent=1 // pred_fallthru
      _
    // Predicated region
    $region14: #{tpu_custom_call.1} parent=1 // pred_check
      _
    $region15: #{tpu_custom_call.1} parent=1 // pred_check_branch
      %44 = sbr.rel (0) target = $region17
    $region16: #{tpu_custom_call.1} parent=1 // pred_region
      %45 = dma.done [#allocation4], 2048
    $region17: #{tpu_custom_call.1} parent=1 // pred_fallthru
      _
    // Predicated region
    $region18: #{tpu_custom_call.1} parent=1 // pred_check
      _
    $region19: #{tpu_custom_call.1} parent=1 // pred_check_branch
      %47 = sbr.rel (0) target = $region21
    $region20: #{tpu_custom_call.1} parent=1 // pred_region
      %48 = dma.done [#allocation7], 128
    $region21: #{tpu_custom_call.1} parent=1 // pred_fallthru
      _
    // Predicated region
    $region22: #{tpu_custom_call.1} parent=1 // pred_check
      _
    $region23: #{tpu_custom_call.1} parent=1 // pred_check_branch
      %50 = sbr.rel (0) target = $region25
    $region24: #{tpu_custom_call.1} parent=1 // pred_region
      %51 = dma.done [#allocation7], 128
    $region25: #{tpu_custom_call.1} parent=1 // pred_fallthru
      _
    %p52 = scmp.eq.s32.totalorder 0, 0
    // Predicated region
    $region26: #{tpu_custom_call.1} parent=1 // pred_check
      %p53 = pneg %p52
    $region27: #{tpu_custom_call.1} parent=1 // pred_check_branch
      %55 = sbr.rel (%p53) target = $region29
    $region28: #{tpu_custom_call.1} parent=1 // pred_region
      %vm56 = vcmask 0
      %57 = vst.msk [vmem:[#allocation2] sm:$0x1] %vm56, 0.0
    $region29: #{tpu_custom_call.1} parent=1 // pred_fallthru
      _
    %v58 = vld [vmem:[#allocation8] sm:$0xff]
    %v59 = vld [vmem:[#allocation6] sm:$0xff]
    %v60 = vsub.f32 %v58, %v59
    %v61 = vld [vmem:[#allocation3] sm:$0xff]
    %v62 = vld [vmem:[#allocation3 + $0x8] sm:$0xff]
    %v63 = vld [vmem:[#allocation3 + $0x10] sm:$0xff]
    %v64 = vld [vmem:[#allocation3 + $0x18] sm:$0xff]
    %v65 = vld [vmem:[#allocation3 + $0x20] sm:$0xff]
    %v66 = vld [vmem:[#allocation3 + $0x28] sm:$0xff]
    %v67 = vld [vmem:[#allocation3 + $0x30] sm:$0xff]
    %v68 = vld [vmem:[#allocation3 + $0x38] sm:$0xff]
    %v69 = vld [vmem:[#allocation3 + $0x40] sm:$0xff]
    %v70 = vld [vmem:[#allocation3 + $0x48] sm:$0xff]
    %v71 = vld [vmem:[#allocation3 + $0x50] sm:$0xff]
    %v72 = vld [vmem:[#allocation3 + $0x58] sm:$0xff]
    %v73 = vld [vmem:[#allocation3 + $0x60] sm:$0xff]
    %v74 = vld [vmem:[#allocation3 + $0x68] sm:$0xff]
    %v75 = vld [vmem:[#allocation3 + $0x70] sm:$0xff]
    %v76 = vld [vmem:[#allocation3 + $0x78] sm:$0xff]
    %77 = vmatprep.subr.mxu0 0.0
    %v78 = vand.u32 %v61, 4294901760
    %79 = vmatpush1.msra.mxu0 %v78
    %80 = vmatprep.subr.mxu0 0.0
    %v81 = vand.u32 %v62, 4294901760
    %82 = vmatpush1.msra.mxu0 %v81
    %83 = vmatprep.subr.mxu0 0.0
    %v84 = vand.u32 %v63, 4294901760
    %85 = vmatpush1.msra.mxu0 %v84
    %86 = vmatprep.subr.mxu0 0.0
    %v87 = vand.u32 %v64, 4294901760
    %88 = vmatpush1.msra.mxu0 %v87
    %89 = vmatprep.subr.mxu0 0.0
    %v90 = vand.u32 %v65, 4294901760
    %91 = vmatpush1.msra.mxu0 %v90
    %92 = vmatprep.subr.mxu0 0.0
    %v93 = vand.u32 %v66, 4294901760
    %94 = vmatpush1.msra.mxu0 %v93
    %95 = vmatprep.subr.mxu0 0.0
    %v96 = vand.u32 %v67, 4294901760
    %97 = vmatpush1.msra.mxu0 %v96
    %98 = vmatprep.subr.mxu0 0.0
    %v99 = vand.u32 %v68, 4294901760
    %100 = vmatpush1.msra.mxu0 %v99
    %101 = vmatprep.subr.mxu0 0.0
    %v102 = vand.u32 %v69, 4294901760
    %103 = vmatpush1.msra.mxu0 %v102
    %104 = vmatprep.subr.mxu0 0.0
    %v105 = vand.u32 %v70, 4294901760
    %106 = vmatpush1.msra.mxu0 %v105
    %107 = vmatprep.subr.mxu0 0.0
    %v108 = vand.u32 %v71, 4294901760
    %109 = vmatpush1.msra.mxu0 %v108
    %110 = vmatprep.subr.mxu0 0.0
    %v111 = vand.u32 %v72, 4294901760
    %112 = vmatpush1.msra.mxu0 %v111
    %113 = vmatprep.subr.mxu0 0.0
    %v114 = vand.u32 %v73, 4294901760
    %115 = vmatpush1.msra.mxu0 %v114
    %116 = vmatprep.subr.mxu0 0.0
    %v117 = vand.u32 %v74, 4294901760
    %118 = vmatpush1.msra.mxu0 %v117
    %119 = vmatprep.subr.mxu0 0.0
    %v120 = vand.u32 %v75, 4294901760
    %121 = vmatpush1.msra.mxu0 %v120
    %122 = vmatprep.subr.mxu0 0.0
    %v123 = vand.u32 %v76, 4294901760
    %124 = vmatpush1.msra.mxu0 %v123
    %125 = vmatprep.subr.mxu0 0.0
    %126 = vmatpush1.msra.mxu0 0.0
    %127 = vmatprep.subr.mxu0 0.0
    %128 = vmatpush1.msra.mxu0 0.0
    %129 = vmatprep.subr.mxu0 0.0
    %130 = vmatpush1.msra.mxu0 0.0
    %131 = vmatprep.subr.mxu0 0.0
    %132 = vmatpush1.msra.mxu0 0.0
    %133 = vmatprep.subr.mxu0 0.0
    %134 = vmatpush1.msra.mxu0 0.0
    %135 = vmatprep.subr.mxu0 0.0
    %136 = vmatpush1.msra.mxu0 0.0
    %137 = vmatprep.subr.mxu0 0.0
    %138 = vmatpush1.msra.mxu0 0.0
    %139 = vmatprep.subr.mxu0 0.0
    %140 = vmatpush1.msra.mxu0 0.0
    %141 = vmatprep.subr.mxu0 0.0
    %142 = vmatpush1.msra.mxu0 0.0
    %143 = vmatprep.subr.mxu0 0.0
    %144 = vmatpush1.msra.mxu0 0.0
    %145 = vmatprep.subr.mxu0 0.0
    %146 = vmatpush1.msra.mxu0 0.0
    %147 = vmatprep.subr.mxu0 0.0
    %148 = vmatpush1.msra.mxu0 0.0
    %149 = vmatprep.subr.mxu0 0.0
    %150 = vmatpush1.msra.mxu0 0.0
    %151 = vmatprep.subr.mxu0 0.0
    %152 = vmatpush1.msra.mxu0 0.0
    %153 = vmatprep.subr.mxu0 0.0
    %154 = vmatpush1.msra.mxu0 0.0
    %155 = vmatprep.subr.mxu0 0.0
    %156 = vmatpush1.msra.mxu0 0.0
    %157 = vmatprep.mubr.f32.mxu0 0.0
    %v158 = vand.u32 %v60, 4294901760
    %v159 = vsub.f32 %v60, %v158
    %v160 = vand.u32 %v159, 4294901760
    %v161 = vsub.f32 %v159, %v160
    %v162 = vand.u32 %v161, 4294901760
    %163 = vmatmul.mubr.f32.gmra.mrb[0].mxu0 %v162
    %v164 = vpop.f32.mrb[0].mxu0
    %v165 = vadd.f32 0.0, %v164
    %v166 = vpop.f32.mrb[0].mxu0
    %167 = vdwg.mxu0
    %168 = vmatprep.subr.mxu0 0.0
    %v169 = vand.u32 %v61, 4294901760
    %v170 = vsub.f32 %v61, %v169
    %v171 = vand.u32 %v170, 4294901760
    %v172 = vsub.f32 %v170, %v171
    %v173 = vand.u32 %v172, 4294901760
    %174 = vmatpush1.msra.mxu0 %v173
    %175 = vmatprep.subr.mxu0 0.0
    %v176 = vand.u32 %v62, 4294901760
    %v177 = vsub.f32 %v62, %v176
    %v178 = vand.u32 %v177, 4294901760
    %v179 = vsub.f32 %v177, %v178
    %v180 = vand.u32 %v179, 4294901760
    %181 = vmatpush1.msra.mxu0 %v180
    %182 = vmatprep.subr.mxu0 0.0
    %v183 = vand.u32 %v63, 4294901760
    %v184 = vsub.f32 %v63, %v183
    %v185 = vand.u32 %v184, 4294901760
    %v186 = vsub.f32 %v184, %v185
    %v187 = vand.u32 %v186, 4294901760
    %188 = vmatpush1.msra.mxu0 %v187
    %189 = vmatprep.subr.mxu0 0.0
    %v190 = vand.u32 %v64, 4294901760
    %v191 = vsub.f32 %v64, %v190
    %v192 = vand.u32 %v191, 4294901760
    %v193 = vsub.f32 %v191, %v192
    %v194 = vand.u32 %v193, 4294901760
    %195 = vmatpush1.msra.mxu0 %v194
    %196 = vmatprep.subr.mxu0 0.0
    %v197 = vand.u32 %v65, 4294901760
    %v198 = vsub.f32 %v65, %v197
    %v199 = vand.u32 %v198, 4294901760
    %v200 = vsub.f32 %v198, %v199
    %v201 = vand.u32 %v200, 4294901760
    %202 = vmatpush1.msra.mxu0 %v201
    %203 = vmatprep.subr.mxu0 0.0
    %v204 = vand.u32 %v66, 4294901760
    %v205 = vsub.f32 %v66, %v204
    %v206 = vand.u32 %v205, 4294901760
    %v207 = vsub.f32 %v205, %v206
    %v208 = vand.u32 %v207, 4294901760
    %209 = vmatpush1.msra.mxu0 %v208
    %210 = vmatprep.subr.mxu0 0.0
    %v211 = vand.u32 %v67, 4294901760
    %v212 = vsub.f32 %v67, %v211
    %v213 = vand.u32 %v212, 4294901760
    %v214 = vsub.f32 %v212, %v213
    %v215 = vand.u32 %v214, 4294901760
    %216 = vmatpush1.msra.mxu0 %v215
    %217 = vmatprep.subr.mxu0 0.0
    %v218 = vand.u32 %v68, 4294901760
    %v219 = vsub.f32 %v68, %v218
    %v220 = vand.u32 %v219, 4294901760
    %v221 = vsub.f32 %v219, %v220
    %v222 = vand.u32 %v221, 4294901760
    %223 = vmatpush1.msra.mxu0 %v222
    %224 = vmatprep.subr.mxu0 0.0
    %v225 = vand.u32 %v69, 4294901760
    %v226 = vsub.f32 %v69, %v225
    %v227 = vand.u32 %v226, 4294901760
    %v228 = vsub.f32 %v226, %v227
    %v229 = vand.u32 %v228, 4294901760
    %230 = vmatpush1.msra.mxu0 %v229
    %231 = vmatprep.subr.mxu0 0.0
    %v232 = vand.u32 %v70, 4294901760
    %v233 = vsub.f32 %v70, %v232
    %v234 = vand.u32 %v233, 4294901760
    %v235 = vsub.f32 %v233, %v234
    %v236 = vand.u32 %v235, 4294901760
    %237 = vmatpush1.msra.mxu0 %v236
    %238 = vmatprep.subr.mxu0 0.0
    %v239 = vand.u32 %v71, 4294901760
    %v240 = vsub.f32 %v71, %v239
    %v241 = vand.u32 %v240, 4294901760
    %v242 = vsub.f32 %v240, %v241
    %v243 = vand.u32 %v242, 4294901760
    %244 = vmatpush1.msra.mxu0 %v243
    %245 = vmatprep.subr.mxu0 0.0
    %v246 = vand.u32 %v72, 4294901760
    %v247 = vsub.f32 %v72, %v246
    %v248 = vand.u32 %v247, 4294901760
    %v249 = vsub.f32 %v247, %v248
    %v250 = vand.u32 %v249, 4294901760
    %251 = vmatpush1.msra.mxu0 %v250
    %252 = vmatprep.subr.mxu0 0.0
    %v253 = vand.u32 %v73, 4294901760
    %v254 = vsub.f32 %v73, %v253
    %v255 = vand.u32 %v254, 4294901760
    %v256 = vsub.f32 %v254, %v255
    %v257 = vand.u32 %v256, 4294901760
    %258 = vmatpush1.msra.mxu0 %v257
    %259 = vmatprep.subr.mxu0 0.0
    %v260 = vand.u32 %v74, 4294901760
    %v261 = vsub.f32 %v74, %v260
    %v262 = vand.u32 %v261, 4294901760
    %v263 = vsub.f32 %v261, %v262
    %v264 = vand.u32 %v263, 4294901760
    %265 = vmatpush1.msra.mxu0 %v264
    %266 = vmatprep.subr.mxu0 0.0
    %v267 = vand.u32 %v75, 4294901760
    %v268 = vsub.f32 %v75, %v267
    %v269 = vand.u32 %v268, 4294901760
    %v270 = vsub.f32 %v268, %v269
    %v271 = vand.u32 %v270, 4294901760
    %272 = vmatpush1.msra.mxu0 %v271
    %273 = vmatprep.subr.mxu0 0.0
    %v274 = vand.u32 %v76, 4294901760
    %v275 = vsub.f32 %v76, %v274
    %v276 = vand.u32 %v275, 4294901760
    %v277 = vsub.f32 %v275, %v276
    %v278 = vand.u32 %v277, 4294901760
    %279 = vmatpush1.msra.mxu0 %v278
    %280 = vmatprep.subr.mxu0 0.0
    %281 = vmatpush1.msra.mxu0 0.0
    %282 = vmatprep.subr.mxu0 0.0
    %283 = vmatpush1.msra.mxu0 0.0
    %284 = vmatprep.subr.mxu0 0.0
    %285 = vmatpush1.msra.mxu0 0.0
    %286 = vmatprep.subr.mxu0 0.0
    %287 = vmatpush1.msra.mxu0 0.0
    %288 = vmatprep.subr.mxu0 0.0
    %289 = vmatpush1.msra.mxu0 0.0
    %290 = vmatprep.subr.mxu0 0.0
    %291 = vmatpush1.msra.mxu0 0.0
    %292 = vmatprep.subr.mxu0 0.0
    %293 = vmatpush1.msra.mxu0 0.0
    %294 = vmatprep.subr.mxu0 0.0
    %295 = vmatpush1.msra.mxu0 0.0
    %296 = vmatprep.subr.mxu0 0.0
    %297 = vmatpush1.msra.mxu0 0.0
    %298 = vmatprep.subr.mxu0 0.0
    %299 = vmatpush1.msra.mxu0 0.0
    %300 = vmatprep.subr.mxu0 0.0
    %301 = vmatpush1.msra.mxu0 0.0
    %302 = vmatprep.subr.mxu0 0.0
    %303 = vmatpush1.msra.mxu0 0.0
    %304 = vmatprep.subr.mxu0 0.0
    %305 = vmatpush1.msra.mxu0 0.0
    %306 = vmatprep.subr.mxu0 0.0
    %307 = vmatpush1.msra.mxu0 0.0
    %308 = vmatprep.subr.mxu0 0.0
    %309 = vmatpush1.msra.mxu0 0.0
    %310 = vmatprep.subr.mxu0 0.0
    %311 = vmatpush1.msra.mxu0 0.0
    %312 = vmatprep.mubr.f32.mxu0 0.0
    %v313 = vand.u32 %v60, 4294901760
    %314 = vmatmul.mubr.f32.gmra.mrb[0].mxu0 %v313
    %v315 = vpop.f32.mrb[0].mxu0
    %v316 = vadd.f32 %v165, %v315
    %v317 = vpop.f32.mrb[0].mxu0
    %318 = vdwg.mxu0
    %319 = vmatprep.subr.mxu0 0.0
    %v320 = vand.u32 %v61, 4294901760
    %v321 = vsub.f32 %v61, %v320
    %322 = vmatpush1.msra.mxu0 %v321
    %323 = vmatprep.subr.mxu0 0.0
    %v324 = vand.u32 %v62, 4294901760
    %v325 = vsub.f32 %v62, %v324
    %326 = vmatpush1.msra.mxu0 %v325
    %327 = vmatprep.subr.mxu0 0.0
    %v328 = vand.u32 %v63, 4294901760
    %v329 = vsub.f32 %v63, %v328
    %330 = vmatpush1.msra.mxu0 %v329
    %331 = vmatprep.subr.mxu0 0.0
    %v332 = vand.u32 %v64, 4294901760
    %v333 = vsub.f32 %v64, %v332
    %334 = vmatpush1.msra.mxu0 %v333
    %335 = vmatprep.subr.mxu0 0.0
    %v336 = vand.u32 %v65, 4294901760
    %v337 = vsub.f32 %v65, %v336
    %338 = vmatpush1.msra.mxu0 %v337
    %339 = vmatprep.subr.mxu0 0.0
    %v340 = vand.u32 %v66, 4294901760
    %v341 = vsub.f32 %v66, %v340
    %342 = vmatpush1.msra.mxu0 %v341
    %343 = vmatprep.subr.mxu0 0.0
    %v344 = vand.u32 %v67, 4294901760
    %v345 = vsub.f32 %v67, %v344
    %346 = vmatpush1.msra.mxu0 %v345
    %347 = vmatprep.subr.mxu0 0.0
    %v348 = vand.u32 %v68, 4294901760
    %v349 = vsub.f32 %v68, %v348
    %350 = vmatpush1.msra.mxu0 %v349
    %351 = vmatprep.subr.mxu0 0.0
    %v352 = vand.u32 %v69, 4294901760
    %v353 = vsub.f32 %v69, %v352
    %354 = vmatpush1.msra.mxu0 %v353
    %355 = vmatprep.subr.mxu0 0.0
    %v356 = vand.u32 %v70, 4294901760
    %v357 = vsub.f32 %v70, %v356
    %358 = vmatpush1.msra.mxu0 %v357
    %359 = vmatprep.subr.mxu0 0.0
    %v360 = vand.u32 %v71, 4294901760
    %v361 = vsub.f32 %v71, %v360
    %362 = vmatpush1.msra.mxu0 %v361
    %363 = vmatprep.subr.mxu0 0.0
    %v364 = vand.u32 %v72, 4294901760
    %v365 = vsub.f32 %v72, %v364
    %366 = vmatpush1.msra.mxu0 %v365
    %367 = vmatprep.subr.mxu0 0.0
    %v368 = vand.u32 %v73, 4294901760
    %v369 = vsub.f32 %v73, %v368
    %370 = vmatpush1.msra.mxu0 %v369
    %371 = vmatprep.subr.mxu0 0.0
    %v372 = vand.u32 %v74, 4294901760
    %v373 = vsub.f32 %v74, %v372
    %374 = vmatpush1.msra.mxu0 %v373
    %375 = vmatprep.subr.mxu0 0.0
    %v376 = vand.u32 %v75, 4294901760
    %v377 = vsub.f32 %v75, %v376
    %378 = vmatpush1.msra.mxu0 %v377
    %379 = vmatprep.subr.mxu0 0.0
    %v380 = vand.u32 %v76, 4294901760
    %v381 = vsub.f32 %v76, %v380
    %382 = vmatpush1.msra.mxu0 %v381
    %383 = vmatprep.subr.mxu0 0.0
    %384 = vmatpush1.msra.mxu0 0.0
    %385 = vmatprep.subr.mxu0 0.0
    %386 = vmatpush1.msra.mxu0 0.0
    %387 = vmatprep.subr.mxu0 0.0
    %388 = vmatpush1.msra.mxu0 0.0
    %389 = vmatprep.subr.mxu0 0.0
    %390 = vmatpush1.msra.mxu0 0.0
    %391 = vmatprep.subr.mxu0 0.0
    %392 = vmatpush1.msra.mxu0 0.0
    %393 = vmatprep.subr.mxu0 0.0
    %394 = vmatpush1.msra.mxu0 0.0
    %395 = vmatprep.subr.mxu0 0.0
    %396 = vmatpush1.msra.mxu0 0.0
    %397 = vmatprep.subr.mxu0 0.0
    %398 = vmatpush1.msra.mxu0 0.0
    %399 = vmatprep.subr.mxu0 0.0
    %400 = vmatpush1.msra.mxu0 0.0
    %401 = vmatprep.subr.mxu0 0.0
    %402 = vmatpush1.msra.mxu0 0.0
    %403 = vmatprep.subr.mxu0 0.0
    %404 = vmatpush1.msra.mxu0 0.0
    %405 = vmatprep.subr.mxu0 0.0
    %406 = vmatpush1.msra.mxu0 0.0
    %407 = vmatprep.subr.mxu0 0.0
    %408 = vmatpush1.msra.mxu0 0.0
    %409 = vmatprep.subr.mxu0 0.0
    %410 = vmatpush1.msra.mxu0 0.0
    %411 = vmatprep.subr.mxu0 0.0
    %412 = vmatpush1.msra.mxu0 0.0
    %413 = vmatprep.subr.mxu0 0.0
    %414 = vmatpush1.msra.mxu0 0.0
    %415 = vmatprep.mubr.f32.mxu0 0.0
    %v416 = vand.u32 %v60, 4294901760
    %v417 = vsub.f32 %v60, %v416
    %418 = vmatmul.mubr.f32.gmra.mrb[0].mxu0 %v417
    %v419 = vpop.f32.mrb[0].mxu0
    %v420 = vadd.f32 %v316, %v419
    %v421 = vpop.f32.mrb[0].mxu0
    %422 = vdwg.mxu0
    %423 = vmatprep.subr.mxu0 0.0
    %v424 = vand.u32 %v61, 4294901760
    %425 = vmatpush1.msra.mxu0 %v424
    %426 = vmatprep.subr.mxu0 0.0
    %v427 = vand.u32 %v62, 4294901760
    %428 = vmatpush1.msra.mxu0 %v427
    %429 = vmatprep.subr.mxu0 0.0
    %v430 = vand.u32 %v63, 4294901760
    %431 = vmatpush1.msra.mxu0 %v430
    %432 = vmatprep.subr.mxu0 0.0
    %v433 = vand.u32 %v64, 4294901760
    %434 = vmatpush1.msra.mxu0 %v433
    %435 = vmatprep.subr.mxu0 0.0
    %v436 = vand.u32 %v65, 4294901760
    %437 = vmatpush1.msra.mxu0 %v436
    %438 = vmatprep.subr.mxu0 0.0
    %v439 = vand.u32 %v66, 4294901760
    %440 = vmatpush1.msra.mxu0 %v439
    %441 = vmatprep.subr.mxu0 0.0
    %v442 = vand.u32 %v67, 4294901760
    %443 = vmatpush1.msra.mxu0 %v442
    %444 = vmatprep.subr.mxu0 0.0
    %v445 = vand.u32 %v68, 4294901760
    %446 = vmatpush1.msra.mxu0 %v445
    %447 = vmatprep.subr.mxu0 0.0
    %v448 = vand.u32 %v69, 4294901760
    %449 = vmatpush1.msra.mxu0 %v448
    %450 = vmatprep.subr.mxu0 0.0
    %v451 = vand.u32 %v70, 4294901760
    %452 = vmatpush1.msra.mxu0 %v451
    %453 = vmatprep.subr.mxu0 0.0
    %v454 = vand.u32 %v71, 4294901760
    %455 = vmatpush1.msra.mxu0 %v454
    %456 = vmatprep.subr.mxu0 0.0
    %v457 = vand.u32 %v72, 4294901760
    %458 = vmatpush1.msra.mxu0 %v457
    %459 = vmatprep.subr.mxu0 0.0
    %v460 = vand.u32 %v73, 4294901760
    %461 = vmatpush1.msra.mxu0 %v460
    %462 = vmatprep.subr.mxu0 0.0
    %v463 = vand.u32 %v74, 4294901760
    %464 = vmatpush1.msra.mxu0 %v463
    %465 = vmatprep.subr.mxu0 0.0
    %v466 = vand.u32 %v75, 4294901760
    %467 = vmatpush1.msra.mxu0 %v466
    %468 = vmatprep.subr.mxu0 0.0
    %v469 = vand.u32 %v76, 4294901760
    %470 = vmatpush1.msra.mxu0 %v469
    %471 = vmatprep.subr.mxu0 0.0
    %472 = vmatpush1.msra.mxu0 0.0
    %473 = vmatprep.subr.mxu0 0.0
    %474 = vmatpush1.msra.mxu0 0.0
    %475 = vmatprep.subr.mxu0 0.0
    %476 = vmatpush1.msra.mxu0 0.0
    %477 = vmatprep.subr.mxu0 0.0
    %478 = vmatpush1.msra.mxu0 0.0
    %479 = vmatprep.subr.mxu0 0.0
    %480 = vmatpush1.msra.mxu0 0.0
    %481 = vmatprep.subr.mxu0 0.0
    %482 = vmatpush1.msra.mxu0 0.0
    %483 = vmatprep.subr.mxu0 0.0
    %484 = vmatpush1.msra.mxu0 0.0
    %485 = vmatprep.subr.mxu0 0.0
    %486 = vmatpush1.msra.mxu0 0.0
    %487 = vmatprep.subr.mxu0 0.0
    %488 = vmatpush1.msra.mxu0 0.0
    %489 = vmatprep.subr.mxu0 0.0
    %490 = vmatpush1.msra.mxu0 0.0
    %491 = vmatprep.subr.mxu0 0.0
    %492 = vmatpush1.msra.mxu0 0.0
    %493 = vmatprep.subr.mxu0 0.0
    %494 = vmatpush1.msra.mxu0 0.0
    %495 = vmatprep.subr.mxu0 0.0
    %496 = vmatpush1.msra.mxu0 0.0
    %497 = vmatprep.subr.mxu0 0.0
    %498 = vmatpush1.msra.mxu0 0.0
    %499 = vmatprep.subr.mxu0 0.0
    %500 = vmatpush1.msra.mxu0 0.0
    %501 = vmatprep.subr.mxu0 0.0
    %502 = vmatpush1.msra.mxu0 0.0
    %503 = vmatprep.mubr.f32.mxu0 0.0
    %v504 = vand.u32 %v60, 4294901760
    %v505 = vsub.f32 %v60, %v504
    %v506 = vand.u32 %v505, 4294901760
    %507 = vmatmul.mubr.f32.gmra.mrb[0].mxu0 %v506
    %v508 = vpop.f32.mrb[0].mxu0
    %v509 = vadd.f32 %v420, %v508
    %v510 = vpop.f32.mrb[0].mxu0
    %511 = vdwg.mxu0
    %512 = vmatprep.subr.mxu0 0.0
    %v513 = vand.u32 %v61, 4294901760
    %v514 = vsub.f32 %v61, %v513
    %v515 = vand.u32 %v514, 4294901760
    %516 = vmatpush1.msra.mxu0 %v515
    %517 = vmatprep.subr.mxu0 0.0
    %v518 = vand.u32 %v62, 4294901760
    %v519 = vsub.f32 %v62, %v518
    %v520 = vand.u32 %v519, 4294901760
    %521 = vmatpush1.msra.mxu0 %v520
    %522 = vmatprep.subr.mxu0 0.0
    %v523 = vand.u32 %v63, 4294901760
    %v524 = vsub.f32 %v63, %v523
    %v525 = vand.u32 %v524, 4294901760
    %526 = vmatpush1.msra.mxu0 %v525
    %527 = vmatprep.subr.mxu0 0.0
    %v528 = vand.u32 %v64, 4294901760
    %v529 = vsub.f32 %v64, %v528
    %v530 = vand.u32 %v529, 4294901760
    %531 = vmatpush1.msra.mxu0 %v530
    %532 = vmatprep.subr.mxu0 0.0
    %v533 = vand.u32 %v65, 4294901760
    %v534 = vsub.f32 %v65, %v533
    %v535 = vand.u32 %v534, 4294901760
    %536 = vmatpush1.msra.mxu0 %v535
    %537 = vmatprep.subr.mxu0 0.0
    %v538 = vand.u32 %v66, 4294901760
    %v539 = vsub.f32 %v66, %v538
    %v540 = vand.u32 %v539, 4294901760
    %541 = vmatpush1.msra.mxu0 %v540
    %542 = vmatprep.subr.mxu0 0.0
    %v543 = vand.u32 %v67, 4294901760
    %v544 = vsub.f32 %v67, %v543
    %v545 = vand.u32 %v544, 4294901760
    %546 = vmatpush1.msra.mxu0 %v545
    %547 = vmatprep.subr.mxu0 0.0
    %v548 = vand.u32 %v68, 4294901760
    %v549 = vsub.f32 %v68, %v548
    %v550 = vand.u32 %v549, 4294901760
    %551 = vmatpush1.msra.mxu0 %v550
    %552 = vmatprep.subr.mxu0 0.0
    %v553 = vand.u32 %v69, 4294901760
    %v554 = vsub.f32 %v69, %v553
    %v555 = vand.u32 %v554, 4294901760
    %556 = vmatpush1.msra.mxu0 %v555
    %557 = vmatprep.subr.mxu0 0.0
    %v558 = vand.u32 %v70, 4294901760
    %v559 = vsub.f32 %v70, %v558
    %v560 = vand.u32 %v559, 4294901760
    %561 = vmatpush1.msra.mxu0 %v560
    %562 = vmatprep.subr.mxu0 0.0
    %v563 = vand.u32 %v71, 4294901760
    %v564 = vsub.f32 %v71, %v563
    %v565 = vand.u32 %v564, 4294901760
    %566 = vmatpush1.msra.mxu0 %v565
    %567 = vmatprep.subr.mxu0 0.0
    %v568 = vand.u32 %v72, 4294901760
    %v569 = vsub.f32 %v72, %v568
    %v570 = vand.u32 %v569, 4294901760
    %571 = vmatpush1.msra.mxu0 %v570
    %572 = vmatprep.subr.mxu0 0.0
    %v573 = vand.u32 %v73, 4294901760
    %v574 = vsub.f32 %v73, %v573
    %v575 = vand.u32 %v574, 4294901760
    %576 = vmatpush1.msra.mxu0 %v575
    %577 = vmatprep.subr.mxu0 0.0
    %v578 = vand.u32 %v74, 4294901760
    %v579 = vsub.f32 %v74, %v578
    %v580 = vand.u32 %v579, 4294901760
    %581 = vmatpush1.msra.mxu0 %v580
    %582 = vmatprep.subr.mxu0 0.0
    %v583 = vand.u32 %v75, 4294901760
    %v584 = vsub.f32 %v75, %v583
    %v585 = vand.u32 %v584, 4294901760
    %586 = vmatpush1.msra.mxu0 %v585
    %587 = vmatprep.subr.mxu0 0.0
    %v588 = vand.u32 %v76, 4294901760
    %v589 = vsub.f32 %v76, %v588
    %v590 = vand.u32 %v589, 4294901760
    %591 = vmatpush1.msra.mxu0 %v590
    %592 = vmatprep.subr.mxu0 0.0
    %593 = vmatpush1.msra.mxu0 0.0
    %594 = vmatprep.subr.mxu0 0.0
    %595 = vmatpush1.msra.mxu0 0.0
    %596 = vmatprep.subr.mxu0 0.0
    %597 = vmatpush1.msra.mxu0 0.0
    %598 = vmatprep.subr.mxu0 0.0
    %599 = vmatpush1.msra.mxu0 0.0
    %600 = vmatprep.subr.mxu0 0.0
    %601 = vmatpush1.msra.mxu0 0.0
    %602 = vmatprep.subr.mxu0 0.0
    %603 = vmatpush1.msra.mxu0 0.0
    %604 = vmatprep.subr.mxu0 0.0
    %605 = vmatpush1.msra.mxu0 0.0
    %606 = vmatprep.subr.mxu0 0.0
    %607 = vmatpush1.msra.mxu0 0.0
    %608 = vmatprep.subr.mxu0 0.0
    %609 = vmatpush1.msra.mxu0 0.0
    %610 = vmatprep.subr.mxu0 0.0
    %611 = vmatpush1.msra.mxu0 0.0
    %612 = vmatprep.subr.mxu0 0.0
    %613 = vmatpush1.msra.mxu0 0.0
    %614 = vmatprep.subr.mxu0 0.0
    %615 = vmatpush1.msra.mxu0 0.0
    %616 = vmatprep.subr.mxu0 0.0
    %617 = vmatpush1.msra.mxu0 0.0
    %618 = vmatprep.subr.mxu0 0.0
    %619 = vmatpush1.msra.mxu0 0.0
    %620 = vmatprep.subr.mxu0 0.0
    %621 = vmatpush1.msra.mxu0 0.0
    %622 = vmatprep.subr.mxu0 0.0
    %623 = vmatpush1.msra.mxu0 0.0
    %624 = vmatprep.mubr.f32.mxu0 0.0
    %v625 = vand.u32 %v60, 4294901760
    %626 = vmatmul.mubr.f32.gmra.mrb[0].mxu0 %v625
    %v627 = vpop.f32.mrb[0].mxu0
    %v628 = vadd.f32 %v509, %v627
    %v629 = vpop.f32.mrb[0].mxu0
    %630 = vdwg.mxu0
    %631 = vmatprep.subr.mxu0 0.0
    %v632 = vand.u32 %v61, 4294901760
    %633 = vmatpush1.msra.mxu0 %v632
    %634 = vmatprep.subr.mxu0 0.0
    %v635 = vand.u32 %v62, 4294901760
    %636 = vmatpush1.msra.mxu0 %v635
    %637 = vmatprep.subr.mxu0 0.0
    %v638 = vand.u32 %v63, 4294901760
    %639 = vmatpush1.msra.mxu0 %v638
    %640 = vmatprep.subr.mxu0 0.0
    %v641 = vand.u32 %v64, 4294901760
    %642 = vmatpush1.msra.mxu0 %v641
    %643 = vmatprep.subr.mxu0 0.0
    %v644 = vand.u32 %v65, 4294901760
    %645 = vmatpush1.msra.mxu0 %v644
    %646 = vmatprep.subr.mxu0 0.0
    %v647 = vand.u32 %v66, 4294901760
    %648 = vmatpush1.msra.mxu0 %v647
    %649 = vmatprep.subr.mxu0 0.0
    %v650 = vand.u32 %v67, 4294901760
    %651 = vmatpush1.msra.mxu0 %v650
    %652 = vmatprep.subr.mxu0 0.0
    %v653 = vand.u32 %v68, 4294901760
    %654 = vmatpush1.msra.mxu0 %v653
    %655 = vmatprep.subr.mxu0 0.0
    %v656 = vand.u32 %v69, 4294901760
    %657 = vmatpush1.msra.mxu0 %v656
    %658 = vmatprep.subr.mxu0 0.0
    %v659 = vand.u32 %v70, 4294901760
    %660 = vmatpush1.msra.mxu0 %v659
    %661 = vmatprep.subr.mxu0 0.0
    %v662 = vand.u32 %v71, 4294901760
    %663 = vmatpush1.msra.mxu0 %v662
    %664 = vmatprep.subr.mxu0 0.0
    %v665 = vand.u32 %v72, 4294901760
    %666 = vmatpush1.msra.mxu0 %v665
    %667 = vmatprep.subr.mxu0 0.0
    %v668 = vand.u32 %v73, 4294901760
    %669 = vmatpush1.msra.mxu0 %v668
    %670 = vmatprep.subr.mxu0 0.0
    %v671 = vand.u32 %v74, 4294901760
    %672 = vmatpush1.msra.mxu0 %v671
    %673 = vmatprep.subr.mxu0 0.0
    %v674 = vand.u32 %v75, 4294901760
    %675 = vmatpush1.msra.mxu0 %v674
    %676 = vmatprep.subr.mxu0 0.0
    %v677 = vand.u32 %v76, 4294901760
    %678 = vmatpush1.msra.mxu0 %v677
    %679 = vmatprep.subr.mxu0 0.0
    %680 = vmatpush1.msra.mxu0 0.0
    %681 = vmatprep.subr.mxu0 0.0
    %682 = vmatpush1.msra.mxu0 0.0
    %683 = vmatprep.subr.mxu0 0.0
    %684 = vmatpush1.msra.mxu0 0.0
    %685 = vmatprep.subr.mxu0 0.0
    %686 = vmatpush1.msra.mxu0 0.0
    %687 = vmatprep.subr.mxu0 0.0
    %688 = vmatpush1.msra.mxu0 0.0
    %689 = vmatprep.subr.mxu0 0.0
    %690 = vmatpush1.msra.mxu0 0.0
    %691 = vmatprep.subr.mxu0 0.0
    %692 = vmatpush1.msra.mxu0 0.0
    %693 = vmatprep.subr.mxu0 0.0
    %694 = vmatpush1.msra.mxu0 0.0
    %695 = vmatprep.subr.mxu0 0.0
    %696 = vmatpush1.msra.mxu0 0.0
    %697 = vmatprep.subr.mxu0 0.0
    %698 = vmatpush1.msra.mxu0 0.0
    %699 = vmatprep.subr.mxu0 0.0
    %700 = vmatpush1.msra.mxu0 0.0
    %701 = vmatprep.subr.mxu0 0.0
    %702 = vmatpush1.msra.mxu0 0.0
    %703 = vmatprep.subr.mxu0 0.0
    %704 = vmatpush1.msra.mxu0 0.0
    %705 = vmatprep.subr.mxu0 0.0
    %706 = vmatpush1.msra.mxu0 0.0
    %707 = vmatprep.subr.mxu0 0.0
    %708 = vmatpush1.msra.mxu0 0.0
    %709 = vmatprep.subr.mxu0 0.0
    %710 = vmatpush1.msra.mxu0 0.0
    %711 = vmatprep.mubr.f32.mxu0 0.0
    %v712 = vand.u32 %v60, 4294901760
    %713 = vmatmul.mubr.f32.gmra.mrb[0].mxu0 %v712
    %v714 = vpop.f32.mrb[0].mxu0
    %v715 = vadd.f32 %v628, %v714
    %v716 = vpop.f32.mrb[0].mxu0
    %717 = vdwg.mxu0
    %v718 = vmul.f32 %v715, %v715
    %719 = vadd.xlane.f32.xlu0 %v718
    %v720 = vpop.xlane.xlu0 %719
    %v721 = vrot.slane %v720, 4
    %v722 = vadd.f32 %v720, %v721
    %v723 = vrot.slane %v722, 2
    %v724 = vadd.f32 %v722, %v723
    %v725 = vrot.slane %v724, 1
    %v726 = vadd.f32 %v724, %v725
    %v727 = vld [vmem:[#allocation2] sm:$0x1]
    %v728 = vadd.f32 %v727, %v726
    %vm729 = vcmask 0
    %730 = vst.msk [vmem:[#allocation2] sm:$0x1] %vm729, %v728
    // Predicated region
    $region30: #{tpu_custom_call.1} parent=1 // pred_check
      %p731 = pneg %p52
    $region31: #{tpu_custom_call.1} parent=1 // pred_check_branch
      %733 = sbr.rel (%p731) target = $region33
    $region32: #{tpu_custom_call.1} parent=1 // pred_region
      %v734 = vld [vmem:[#allocation2] sm:$0x1]
      %v735 = vmul.f32 %v734, 0.0125
      %v736 = vrsqrt.pop %v735
      %v737 = vmul.f32 %v735, %v736
      %vm738 = vcmp.eq.f32.partialorder %v735, inf
      %v739 = vsel %vm738, %v735, %v737
      %vm740 = vcmp.eq.f32.partialorder %v735, 0.0
      %v741 = vand.u32 %v735, 2147483648
      %v742 = vsel %vm740, %v741, %v739
      %743 = vst.msk [vmem:[#allocation9] sm:$0x1] %vm729, %v742
    $region33: #{tpu_custom_call.1} parent=1 // pred_fallthru
      _
    // Predicated region
    $region34: #{tpu_custom_call.1} parent=1 // pred_check
      _
    $region35: #{tpu_custom_call.1} parent=1 // pred_check_branch
      %745 = sbr.rel (0) target = $region37
    $region36: #{tpu_custom_call.1} parent=1 // pred_region
      %s747 = ssub.s32 16, 16
      %748 = vsyncadd [#allocation5], %s747
      %s750 = sshll.u32 [#allocation9], 4
      %s751 = int_to_ptr.vmem [resolvable:$true] %s750
      %753 = dma.vmem_to_hbm [thread:$0]  %s751, 16, %s3, [#allocation5]
    $region37: #{tpu_custom_call.1} parent=1 // pred_fallthru
      _
    // Predicated region
    $region38: #{tpu_custom_call.1} parent=1 // pred_check
      _
    $region39: #{tpu_custom_call.1} parent=1 // pred_check_branch
      %755 = sbr.rel (0) target = $region41
    $region40: #{tpu_custom_call.1} parent=1 // pred_region
      %756 = dma.done [#allocation5], 16
    $region41: #{tpu_custom_call.1} parent=1 // pred_fallthru
      _
    %757 = vsyncpa [#allocation4], 1
    %758 = vsyncpa [#allocation7], 1
    %759 = vsyncpa [#allocation5], 1

</llo_original>
